<compile_context>
chip_gen: v6e
topology: v6e:2x2x1
jax: 0.10.0
libtpu: 0.0.40
codegen_flags: <defaults>
</compile_context>

<pallas_src>
import functools

import jax
import jax.numpy as jnp
from jax.experimental import pallas as pl
from jax.experimental.pallas import tpu as pltpu


def _round_up(n, m):
    return ((n + m - 1) // m) * m


# Working-set budget for the auto-pipelined tiles (conservative for v7x's 64 MiB physical VMEM;
# the explicit vmem_limit_bytes below is derived from the actual estimate with 2x headroom).
_VMEM_TILE_BUDGET = 28 * 1024 * 1024


# --------------------------------------- Pallas kernel ---------------------------------------
def _normed_linear_kernel(x_ref, w_ref, o_ref, *, eps, mxu_dtype):
    """One (tm, K) tile of rows:  o = normalize_rows(x) @ normalize_cols(W)."""
    x = x_ref[...]                                                     # (tm, K) f32
    w = w_ref[...]                                                     # (K,  N) f32, resident

    # 1 / max(||x_row||, eps) == rsqrt(max(sum x^2, eps^2))            (XLU reduce + EUP rsqrt)
    inv_row = jax.lax.rsqrt(
        jnp.maximum(jnp.sum(x * x, axis=1, keepdims=True), eps * eps))  # (tm, 1)
    # 1 / max(||w_col||, eps) recomputed per tile on the VMEM-resident weight (no HBM traffic);
    # cheaper overall than an extra wrapper-side pass over the weight per call.
    inv_col = jax.lax.rsqrt(
        jnp.maximum(jnp.sum(w * w, axis=0, keepdims=True), eps * eps))  # (1, N)

    if mxu_dtype != x.dtype:
        x_mm = x.astype(mxu_dtype)
        w_mm = w.astype(mxu_dtype)
    else:
        x_mm, w_mm = x, w

    acc = jnp.dot(x_mm, w_mm, preferred_element_type=jnp.float32)      # (tm, N) on the MXU
    # Row/column scaling commutes with the matmul; applying it on the small (tm, N) output tile
    # is cheaper than pre-scaling the (tm, K) / (K, N) operands.
    o_ref[...] = (acc * inv_row * inv_col).astype(o_ref.dtype)


# ------------------------------------------ wrapper ------------------------------------------
def normed_linear(x, weight, *, eps=1e-12, block_m=512, use_bf16_matmul=False):
    """Equivalent of NormedLinear.forward: F.normalize(x, dim=1).mm(F.normalize(weight, dim=0))."""
    M, K = x.shape
    Kw, N = weight.shape
    assert K == Kw, (K, Kw)

    itemsize = 4  # f32 operands
    # VMEM estimate: weight block (double-buffered by the default pipeline, though DMA'd once
    # because its index_map is constant) + double-buffered x and out row streams.
    w_vmem = 2 * K * N * itemsize
    row_vmem = 2 * (K + N) * itemsize
    assert w_vmem < _VMEM_TILE_BUDGET, (
        "weight block too large for a single resident tile; add an N/K grid axis")
    cap = max(8, ((_VMEM_TILE_BUDGET - w_vmem) // row_vmem) // 8 * 8)

    tm = min(block_m, cap)
    m8 = _round_up(M, 8)
    if m8 <= tm:
        # Whole batch fits in one tile.  If there are at least two sublane groups, split into two
        # grid steps so the "parallel" axis can be sharded across v7x's two TensorCores; otherwise
        # use an exact full-array block (no padded / out-of-bounds rows at all).
        tm = _round_up(pl.cdiv(M, 2), 8) if m8 >= 16 else M
    grid_m = pl.cdiv(M, tm)

    vmem_limit = int(min(max(2 * (w_vmem + tm * row_vmem), 32 * 1024 * 1024),
                         64 * 1024 * 1024))

    cost = pl.CostEstimate(
        flops=2 * M * K * N,
        transcendentals=M + grid_m * N,
        bytes_accessed=itemsize * (M * K + K * N + M * N),
    )

    kernel = functools.partial(
        _normed_linear_kernel,
        eps=eps,
        mxu_dtype=jnp.bfloat16 if use_bf16_matmul else jnp.float32,
    )

    return pl.pallas_call(
        kernel,
        out_shape=jax.ShapeDtypeStruct((M, N), jnp.float32),
        grid=(grid_m,),
        in_specs=[
            pl.BlockSpec((tm, K), lambda i: (i, 0)),   # x rows, streamed over the grid
            pl.BlockSpec((K, N), lambda i: (0, 0)),    # raw weight, resident (fetched once)
        ],
        out_specs=pl.BlockSpec((tm, N), lambda i: (i, 0)),
        compiler_params=pltpu.CompilerParams(
            dimension_semantics=("parallel",),
            vmem_limit_bytes=vmem_limit,
        ),
        cost_estimate=cost,
    )(x, weight)


# --------------------------------------- parameter init --------------------------------------
def init_normed_linear_weight(key, in_features, out_features):
    """Mimic weight.data.uniform_(-1, 1).renorm_(2, 1, 1e-05).mul_(100000.0):
    uniform columns always exceed the 1e-5 max-norm, so the net effect is unit-L2 columns."""
    w = jax.random.uniform(key, (in_features, out_features), jnp.float32, -1.0, 1.0)
    col_norm = jnp.sqrt(jnp.sum(w * w, axis=0, keepdims=True))
    return w / jnp.maximum(col_norm, 1e-12)


def _reference(x, weight, eps=1e-12):
    xr = x / jnp.maximum(jnp.linalg.norm(x, axis=1, keepdims=True), eps)
    wr = weight / jnp.maximum(jnp.linalg.norm(weight, axis=0, keepdims=True), eps)
    return xr @ wr


# -------------------------------------------- demo -------------------------------------------
if __name__ == "__main__":
    # Shapes as used inside ComModel_demo: fcn5 = NormedLinear(ef4=128, 4), batch = 2.
    B, IN_FEATURES, OUT_FEATURES = 2, 128, 4

    key = jax.random.PRNGKey(0)
    kw, kx, kx2 = jax.random.split(key, 3)
    weight = init_normed_linear_weight(kw, IN_FEATURES, OUT_FEATURES)
    x = jax.random.normal(kx, (B, IN_FEATURES), jnp.float32)

    fwd = jax.jit(normed_linear)

    out = fwd(x, weight)
    jax.block_until_ready(out)
    assert out.shape == (B, OUT_FEATURES), out.shape
    assert bool(jnp.allclose(out, _reference(x, weight), atol=1e-4, rtol=1e-4)), \
        "mismatch vs reference (demo shape)"

    # Extra correctness case: multi-step "parallel" grid with a partial trailing row block.
    x_big = jax.random.normal(kx2, (37, IN_FEATURES), jnp.float32)
    out_big = fwd(x_big, weight)
    jax.block_until_ready(out_big)
    assert out_big.shape == (37, OUT_FEATURES), out_big.shape
    assert bool(jnp.allclose(out_big, _reference(x_big, weight), atol=1e-4, rtol=1e-4)), \
        "mismatch vs reference (tiled shape)"

    print("KERNEL_OK")
</pallas_src>

<mosaic_0001>
module attributes {stable_mosaic.version = 11 : i64} {
  func.func @_normed_linear_kernel(%arg0: i32, %arg1: memref<2x128xf32, #tpu.memory_space<vmem>>, %arg2: memref<128x4xf32, #tpu.memory_space<vmem>>, %arg3: memref<2x4xf32, #tpu.memory_space<vmem>>) attributes {dimension_semantics = [#tpu.dimension_semantics<parallel>], iteration_bounds = array<i64: 1>, scalar_prefetch = 0 : i64, scratch_operands = 0 : i64, tpu.core_type = #tpu.core_type<tc>, window_params = [{transform_indices = @transform_0, window_bounds = array<i64: 2, 128>}, {pipeline_mode = #tpu.pipeline_mode<synchronous>, transform_indices = @transform_1, window_bounds = array<i64: 128, 4>}, {transform_indices = @transform_2, window_bounds = array<i64: 2, 4>}]} {
    %c0 = arith.constant 0 : index
    %c0_0 = arith.constant 0 : index
    %0 = vector.load %arg1[%c0, %c0_0] : memref<2x128xf32, #tpu.memory_space<vmem>>, vector<2x128xf32>
    %c0_1 = arith.constant 0 : index
    %c0_2 = arith.constant 0 : index
    %1 = vector.load %arg2[%c0_1, %c0_2] : memref<128x4xf32, #tpu.memory_space<vmem>>, vector<128x4xf32>
    %2 = arith.mulf %0, %0 : vector<2x128xf32>
    %cst = arith.constant dense<0.000000e+00> : vector<2xf32>
    %3 = vector.multi_reduction <add>, %2, %cst [1] : vector<2x128xf32> to vector<2xf32>
    %4 = vector.shape_cast %3 : vector<2xf32> to vector<2x1xf32>
    %cst_3 = arith.constant 1.000000e-24 : f32
    %5 = vector.broadcast %cst_3 : f32 to vector<2x1xf32>
    %6 = arith.maximumf %4, %5 : vector<2x1xf32>
    %7 = math.rsqrt %6 : vector<2x1xf32>
    %8 = arith.mulf %1, %1 : vector<128x4xf32>
    %cst_4 = arith.constant dense<0.000000e+00> : vector<4xf32>
    %9 = vector.multi_reduction <add>, %8, %cst_4 [0] : vector<128x4xf32> to vector<4xf32>
    %10 = vector.shape_cast %9 : vector<4xf32> to vector<1x4xf32>
    %cst_5 = arith.constant 1.000000e-24 : f32
    %11 = vector.broadcast %cst_5 : f32 to vector<1x4xf32>
    %12 = arith.maximumf %10, %11 : vector<1x4xf32>
    %13 = math.rsqrt %12 : vector<1x4xf32>
    %cst_6 = arith.constant dense<0.000000e+00> : vector<2x4xf32>
    %14 = tpu.matmul %0, %1, %cst_6 {dimension_numbers = #tpu.dot_dimension_numbers<[1], [0], [0], [1], [0, 0, 1, 1], [], []>} : vector<2x128xf32>, vector<128x4xf32>, vector<2x4xf32> -> vector<2x4xf32>
    %15 = vector.broadcast %7 : vector<2x1xf32> to vector<2x4xf32>
    %16 = arith.mulf %14, %15 : vector<2x4xf32>
    %17 = vector.broadcast %13 : vector<1x4xf32> to vector<2x4xf32>
    %18 = arith.mulf %16, %17 : vector<2x4xf32>
    %c0_7 = arith.constant 0 : index
    %c0_8 = arith.constant 0 : index
    %19 = vector.load %arg3[%c0_7, %c0_8] : memref<2x4xf32, #tpu.memory_space<vmem>>, vector<2x4xf32>
    tpu.vector_store %arg3[%c0_7, %c0_8], %18 {strides = array<i32>} : memref<2x4xf32, #tpu.memory_space<vmem>>, vector<2x4xf32>,
    return
  }
  func.func @transform_0(%arg0: i32) -> (i32, i32) {
    %c0_i32 = arith.constant 0 : i32
    %c0_i32_0 = arith.constant 0 : i32
    return %arg0, %c0_i32 : i32, i32
  }
  func.func @transform_1(%arg0: i32) -> (i32, i32) {
    %c0_i32 = arith.constant 0 : i32
    %c0_i32_0 = arith.constant 0 : i32
    %c0_i32_1 = arith.constant 0 : i32
    return %c0_i32, %c0_i32_0 : i32, i32
  }
  func.func @transform_2(%arg0: i32) -> (i32, i32) {
    %c0_i32 = arith.constant 0 : i32
    %c0_i32_0 = arith.constant 0 : i32
    return %arg0, %c0_i32 : i32, i32
  }
}

</mosaic_0001>

<llo_original>
// kernel: normed_linear.1
$region0: #{normed_linear.1}
  #allocation0 [shape = 'u32[]', space=smem, size = 0x4, offset = 0x4, fixed_abs, tag = 'smem constant byte address 0x4 - core index']
  #allocation1 [shape = 'u32[144,128]{1,0:T(1,128)}', space=vmem, size = 0x12000, scoped, tag = 'internal scratch']
  %s0 = inlined_call_operand.vmem [shape: f32[2,128], index: 0, kind: input, shape index: {}]
  %s1 = inlined_call_operand.vmem [shape: f32[128,4], index: 1, kind: input, shape index: {}]
  %s2 = inlined_call_operand.hbm [shape: f32[2,4], index: 2, kind: output, shape index: {}]
  %s3 = sld [smem:[#allocation0]]
  $region18: #{normed_linear.1} parent=0
    _
  %s5 = ssub.s32 1, %s3
  %s6 = scalar_select 0, %s5, %s3
  $region1: #{normed_linear.1} parent=0
    #allocation2 [shape = 'u8[1024]{0}', space=vmem, size = 0x400, scoped, tag = 'output window, operand 0, single buffered']
    #allocation3 [shape = 's32[1]{0}', space=sflag, size = 0x4, scoped, tag = 'scoped memory for normed_linear.1']
    %7 = vsyncpa [#allocation3], 0
    // Predicated region
    $region2: #{normed_linear.1} parent=1 // pred_check
      _
    $region3: #{normed_linear.1} parent=1 // pred_check_branch
      %9 = sbr.rel (0) target = $region5
    $region4: #{normed_linear.1} parent=1 // pred_region
      _
    $region5: #{normed_linear.1} parent=1 // pred_fallthru
      _
    // Predicated region
    $region6: #{normed_linear.1} parent=1 // pred_check
      _
    $region7: #{normed_linear.1} parent=1 // pred_check_branch
      %11 = sbr.rel (0) target = $region9
    $region8: #{normed_linear.1} parent=1 // pred_region
      _
    $region9: #{normed_linear.1} parent=1 // pred_fallthru
      _
    %v12 = vld [vmem:[%s0] sm:$0x3]
    %v13 = vld [vmem:[%s1] sm:$0xff]
    %v14 = vld [vmem:[%s1 + $0x8] sm:$0xff]
    %v15 = vld [vmem:[%s1 + $0x10] sm:$0xff]
    %v16 = vld [vmem:[%s1 + $0x18] sm:$0xff]
    %v17 = vld [vmem:[%s1 + $0x20] sm:$0xff]
    %v18 = vld [vmem:[%s1 + $0x28] sm:$0xff]
    %v19 = vld [vmem:[%s1 + $0x30] sm:$0xff]
    %v20 = vld [vmem:[%s1 + $0x38] sm:$0xff]
    %v21 = vld [vmem:[%s1 + $0x40] sm:$0xff]
    %v22 = vld [vmem:[%s1 + $0x48] sm:$0xff]
    %v23 = vld [vmem:[%s1 + $0x50] sm:$0xff]
    %v24 = vld [vmem:[%s1 + $0x58] sm:$0xff]
    %v25 = vld [vmem:[%s1 + $0x60] sm:$0xff]
    %v26 = vld [vmem:[%s1 + $0x68] sm:$0xff]
    %v27 = vld [vmem:[%s1 + $0x70] sm:$0xff]
    %v28 = vld [vmem:[%s1 + $0x78] sm:$0xff]
    %v29 = vmul.f32 %v12, %v12
    %vm30 = vcmask 1041408
    %v31 = vsel %vm30, %v29, 0.0
    %32 = vadd.xlane.f32.xlu0 %v31
    %v33 = vpop.xlane.xlu0 %32
    %v34 = vmax.f32 %v33, 1e-24
    %v35 = vrsqrt.pop %v34
    %v36 = vmul.f32 %v13, %v13
    %v37 = vmul.f32 %v14, %v14
    %v38 = vmul.f32 %v15, %v15
    %v39 = vmul.f32 %v16, %v16
    %v40 = vmul.f32 %v17, %v17
    %v41 = vmul.f32 %v18, %v18
    %v42 = vmul.f32 %v19, %v19
    %v43 = vmul.f32 %v20, %v20
    %v44 = vmul.f32 %v21, %v21
    %v45 = vmul.f32 %v22, %v22
    %v46 = vmul.f32 %v23, %v23
    %v47 = vmul.f32 %v24, %v24
    %v48 = vmul.f32 %v25, %v25
    %v49 = vmul.f32 %v26, %v26
    %v50 = vmul.f32 %v27, %v27
    %v51 = vmul.f32 %v28, %v28
    %vm52 = vcmask 31744
    %v53 = vsel %vm52, %v36, 0.0
    %v54 = vsel %vm52, %v37, 0.0
    %v55 = vadd.f32 %v53, %v54
    %v56 = vsel %vm52, %v38, 0.0
    %v57 = vadd.f32 %v55, %v56
    %v58 = vsel %vm52, %v39, 0.0
    %v59 = vadd.f32 %v57, %v58
    %v60 = vsel %vm52, %v40, 0.0
    %v61 = vadd.f32 %v59, %v60
    %v62 = vsel %vm52, %v41, 0.0
    %v63 = vadd.f32 %v61, %v62
    %v64 = vsel %vm52, %v42, 0.0
    %v65 = vadd.f32 %v63, %v64
    %v66 = vsel %vm52, %v43, 0.0
    %v67 = vadd.f32 %v65, %v66
    %v68 = vsel %vm52, %v44, 0.0
    %v69 = vadd.f32 %v67, %v68
    %v70 = vsel %vm52, %v45, 0.0
    %v71 = vadd.f32 %v69, %v70
    %v72 = vsel %vm52, %v46, 0.0
    %v73 = vadd.f32 %v71, %v72
    %v74 = vsel %vm52, %v47, 0.0
    %v75 = vadd.f32 %v73, %v74
    %v76 = vsel %vm52, %v48, 0.0
    %v77 = vadd.f32 %v75, %v76
    %v78 = vsel %vm52, %v49, 0.0
    %v79 = vadd.f32 %v77, %v78
    %v80 = vsel %vm52, %v50, 0.0
    %v81 = vadd.f32 %v79, %v80
    %v82 = vsel %vm52, %v51, 0.0
    %v83 = vadd.f32 %v81, %v82
    %v84 = vrot.slane %v83, 4
    %v85 = vadd.f32 %v83, %v84
    %v86 = vrot.slane %v85, 2
    %v87 = vadd.f32 %v85, %v86
    %v88 = vrot.slane %v87, 1
    %v89 = vadd.f32 %v87, %v88
    %v90 = vmax.f32 %v89, 1e-24
    %v91 = vrsqrt.pop %v90
    %92 = vmatprep.subr.mxu0 0.0
    %93 = vmatpush1.msra.mxu0 %v28
    %94 = vmatprep.subr.mxu0 0.0
    %95 = vmatpush1.msra.mxu0 %v27
    %96 = vmatprep.subr.mxu0 0.0
    %97 = vmatpush1.msra.mxu0 %v26
    %98 = vmatprep.subr.mxu0 0.0
    %99 = vmatpush1.msra.mxu0 %v25
    %100 = vmatprep.subr.mxu0 0.0
    %101 = vmatpush1.msra.mxu0 %v24
    %102 = vmatprep.subr.mxu0 0.0
    %103 = vmatpush1.msra.mxu0 %v23
    %104 = vmatprep.subr.mxu0 0.0
    %105 = vmatpush1.msra.mxu0 %v22
    %106 = vmatprep.subr.mxu0 0.0
    %107 = vmatpush1.msra.mxu0 %v21
    %108 = vmatprep.subr.mxu0 0.0
    %109 = vmatpush1.msra.mxu0 %v20
    %110 = vmatprep.subr.mxu0 0.0
    %111 = vmatpush1.msra.mxu0 %v19
    %112 = vmatprep.subr.mxu0 0.0
    %113 = vmatpush1.msra.mxu0 %v18
    %114 = vmatprep.subr.mxu0 0.0
    %115 = vmatpush1.msra.mxu0 %v17
    %116 = vmatprep.subr.mxu0 0.0
    %117 = vmatpush1.msra.mxu0 %v16
    %118 = vmatprep.subr.mxu0 0.0
    %119 = vmatpush1.msra.mxu0 %v15
    %120 = vmatprep.subr.mxu0 0.0
    %121 = vmatpush1.msra.mxu0 %v14
    %122 = vmatprep.subr.mxu0 0.0
    %123 = vmatpush1.msra.mxu0 %v13
    %124 = vmatprep.subr.mxu0 0.0
    %125 = vmatpush2.msra.mxu0 0.0
    %126 = vmatprep.subr.mxu0 0.0
    %127 = vmatpush2.msra.mxu0 0.0
    %128 = vmatprep.subr.mxu0 0.0
    %129 = vmatpush2.msra.mxu0 0.0
    %130 = vmatprep.subr.mxu0 0.0
    %131 = vmatpush2.msra.mxu0 0.0
    %132 = vmatprep.subr.mxu0 0.0
    %133 = vmatpush2.msra.mxu0 0.0
    %134 = vmatprep.subr.mxu0 0.0
    %135 = vmatpush2.msra.mxu0 0.0
    %136 = vmatprep.subr.mxu0 0.0
    %137 = vmatpush2.msra.mxu0 0.0
    %138 = vmatprep.subr.mxu0 0.0
    %139 = vmatpush2.msra.mxu0 0.0
    %140 = vmatprep.subr.mxu0 0.0
    %141 = vmatpush2.msra.mxu0 0.0
    %142 = vmatprep.subr.mxu0 0.0
    %143 = vmatpush2.msra.mxu0 0.0
    %144 = vmatprep.subr.mxu0 0.0
    %145 = vmatpush2.msra.mxu0 0.0
    %146 = vmatprep.subr.mxu0 0.0
    %147 = vmatpush2.msra.mxu0 0.0
    %148 = vmatprep.subr.mxu0 0.0
    %149 = vmatpush2.msra.mxu0 0.0
    %150 = vmatprep.subr.mxu0 0.0
    %151 = vmatpush2.msra.mxu0 0.0
    %152 = vmatprep.subr.mxu0 0.0
    %153 = vmatpush2.msra.mxu0 0.0
    %154 = vmatprep.subr.mxu0 0.0
    %155 = vmatpush2.msra.mxu0 0.0
    %156 = vmatprep.mubr.f32.mxu0 0.0
    %157 = vmatmul.mubr.f32.gmra.mxu0 %v12
    %v158 = vpop.f32.mrf.mxu0
    %v159 = vadd.f32 0.0, %v158
    %v160 = vpop.f32.mrf.mxu0
    %161 = vdwg.mxu0
    %v162 = vmul.f32 %v159, %v35
    %v163 = vmul.f32 %v162, %v91
    %vm164 = vcmask 25600
    %165 = vst.msk [vmem:[#allocation2] sm:$0x3] %vm164, %v163
    // Predicated region
    $region10: #{normed_linear.1} parent=1 // pred_check
      _
    $region11: #{normed_linear.1} parent=1 // pred_check_branch
      %167 = sbr.rel (0) target = $region13
    $region12: #{normed_linear.1} parent=1 // pred_region
      %s169 = ssub.s32 32, 32
      %170 = vsyncadd [#allocation3], %s169
      %s172 = sshll.u32 [#allocation2], 4
      %s173 = int_to_ptr.vmem [resolvable:$true] %s172
      %175 = dma.vmem_to_hbm [thread:$0]  %s173, 32, %s2, [#allocation3]
    $region13: #{normed_linear.1} parent=1 // pred_fallthru
      _
    // Predicated region
    $region14: #{normed_linear.1} parent=1 // pred_check
      _
    $region15: #{normed_linear.1} parent=1 // pred_check_branch
      %177 = sbr.rel (0) target = $region17
    $region16: #{normed_linear.1} parent=1 // pred_region
      %178 = dma.done [#allocation3], 32
    $region17: #{normed_linear.1} parent=1 // pred_fallthru
      _
    %179 = vsyncpa [#allocation3], 1

</llo_original>
